<compile_context>
chip_gen: v5e
topology: v5e:2x2
jax: 0.10.0
libtpu: 0.0.40
codegen_flags: <defaults>
</compile_context>

<pallas_src>
import functools

import jax
import jax.numpy as jnp
import numpy as np
from jax.experimental import pallas as pl
from jax.experimental.pallas import tpu as pltpu


# ----------------------------- kernels ------------------------------------- #

def hidden_kernel(a_ref, x_ref, w1_ref, b1_ref, w2_ref, o_ref, acc_ref):
    """HW row tile = relu((A_tile @ X) @ W1 + b1) @ W2, K-tiled over node cols."""
    k = pl.program_id(1)

    @pl.when(k == 0)
    def _():
        acc_ref[...] = jnp.zeros_like(acc_ref)

    # accumulate (A @ X) in f32 over the K (node-column) axis
    acc_ref[...] += jnp.dot(a_ref[...], x_ref[...],
                            preferred_element_type=jnp.float32)

    @pl.when(k == pl.num_programs(1) - 1)
    def _():
        ax = acc_ref[...].astype(jnp.bfloat16)                     # (tm, f_pad)
        h = jnp.dot(ax, w1_ref[...], preferred_element_type=jnp.float32)
        h = jnp.maximum(h + b1_ref[...], 0.0)                      # f32 VPU
        o_ref[...] = jnp.dot(h.astype(jnp.bfloat16), w2_ref[...],
                             preferred_element_type=jnp.float32
                             ).astype(o_ref.dtype)


def output_kernel(a_ref, hw_ref, b2_ref, o_ref, acc_ref, *, num_classes):
    """out row tile = log_softmax(A_tile @ HW + b2), K-tiled over node cols."""
    k = pl.program_id(1)

    @pl.when(k == 0)
    def _():
        acc_ref[...] = jnp.zeros_like(acc_ref)

    acc_ref[...] += jnp.dot(a_ref[...], hw_ref[...],
                            preferred_element_type=jnp.float32)

    @pl.when(k == pl.num_programs(1) - 1)
    def _():
        z = acc_ref[...] + b2_ref[...]
        # mask padded class lanes so they don't contaminate max / logsumexp
        col = jax.lax.broadcasted_iota(jnp.int32, z.shape, 1)
        valid = col < num_classes
        z = jnp.where(valid, z, jnp.float32(-1e30))
        m = jnp.max(z, axis=1, keepdims=True)
        zs = z - m
        lse = jnp.log(jnp.sum(jnp.where(valid, jnp.exp(zs), 0.0),
                              axis=1, keepdims=True))
        o_ref[...] = jnp.where(valid, zs - lse, 0.0)


# ----------------------------- wrapper -------------------------------------- #

def _round_up(v, m):
    return ((v + m - 1) // m) * m


def _pad2(a, rows, cols):
    return jnp.pad(a, ((0, rows - a.shape[0]), (0, cols - a.shape[1])))


def _pick_tiles(n):
    """Pick (tm, tk, n_pad): row tile, K tile, common padded node count."""
    n128 = _round_up(n, 128)
    tm = 128
    for cand in (512, 256):           # keep >= 2 row tiles (v7x dual TC)
        if n128 >= 2 * cand:
            tm = cand
            break
    if n128 <= 1024:
        n_pad = _round_up(n, tm)      # single K step: K tile = full width
        tk = n_pad
    else:
        tk = 1024                     # big K tile -> near HBM-roofline DMA
        n_pad = _round_up(n, max(tm, tk))   # tm (pow2*128) divides 1024
    return tm, tk, n_pad


def build_normalized_adjacency(edge_index, num_nodes, n_pad=None,
                               dtype=jnp.float32):
    """Dense D^{-1/2}(A + I)D^{-1/2}, built directly at padded shape / dtype.

    Multi-edges scatter-add (duplicates count, like PyG's gcn_norm) and a
    weight-1 self-loop is added to every node.  Padding rows/cols stay zero
    (their degree is 0 -> dinv 0).
    """
    size = num_nodes if n_pad is None else n_pad
    src, dst = edge_index[0], edge_index[1]
    adj = jnp.zeros((size, size), jnp.float32)
    adj = adj.at[dst, src].add(1.0)              # message flows src -> dst
    idx = jnp.arange(num_nodes)
    adj = adj.at[idx, idx].add(1.0)              # self-loops
    deg = jnp.sum(adj, axis=1)
    dinv = jnp.where(deg > 0, jax.lax.rsqrt(deg), 0.0)
    return (adj * dinv[:, None] * dinv[None, :]).astype(dtype)


def gcn_forward(x, edge_index, w1, b1, w2, b2):
    n, f = x.shape
    h = w1.shape[1]
    c = w2.shape[1]

    tm, tk, n_pad = _pick_tiles(n)
    f_pad = _round_up(f, 128)
    h_pad = _round_up(h, 128)
    c_pad = _round_up(c, 128)
    grid = (n_pad // tm, n_pad // tk)

    # A_hat built pre-padded, already in bf16 (MXU operand dtype); other matmul
    # operands zero-padded + cast to bf16, accumulation stays f32 in-kernel.
    a_p = build_normalized_adjacency(edge_index, n, n_pad, dtype=jnp.bfloat16)
    x_p = _pad2(x, n_pad, f_pad).astype(jnp.bfloat16)
    w1_p = _pad2(w1, f_pad, h_pad).astype(jnp.bfloat16)
    w2_p = _pad2(w2, h_pad, c_pad).astype(jnp.bfloat16)
    b1_p = _pad2(b1, 1, h_pad).astype(jnp.float32)
    b2_p = _pad2(b2, 1, c_pad).astype(jnp.float32)

    cparams = pltpu.CompilerParams(
        dimension_semantics=("parallel", "arbitrary"))

    bytes_a = n_pad * n_pad * 2

    # ---- pass 1: HW = relu((A @ X) @ W1 + b1) @ W2, (row, K) tiled ---------
    ce_hidden = pl.CostEstimate(
        flops=2 * n_pad * n_pad * f_pad
              + 2 * n_pad * f_pad * h_pad
              + 2 * n_pad * h_pad * c_pad,
        transcendentals=0,
        bytes_accessed=bytes_a + n_pad * f_pad * 2
                       + f_pad * h_pad * 2 + h_pad * c_pad * 2
                       + n_pad * c_pad * 2,
    )
    hw = pl.pallas_call(
        hidden_kernel,
        out_shape=jax.ShapeDtypeStruct((n_pad, c_pad), jnp.bfloat16),
        grid=grid,
        in_specs=[
            pl.BlockSpec((tm, tk), lambda i, k: (i, k)),       # A
            pl.BlockSpec((tk, f_pad), lambda i, k: (k, 0)),    # X
            pl.BlockSpec((f_pad, h_pad), lambda i, k: (0, 0)),  # W1
            pl.BlockSpec((1, h_pad), lambda i, k: (0, 0)),      # b1
            pl.BlockSpec((h_pad, c_pad), lambda i, k: (0, 0)),  # W2
        ],
        out_specs=pl.BlockSpec((tm, c_pad), lambda i, k: (i, 0)),
        scratch_shapes=[pltpu.VMEM((tm, f_pad), jnp.float32)],
        compiler_params=cparams,
        cost_estimate=ce_hidden,
    )(a_p, x_p, w1_p, b1_p, w2_p)

    # ---- pass 2: out = log_softmax(A @ HW + b2), (row, K) tiled ------------
    ce_out = pl.CostEstimate(
        flops=2 * n_pad * n_pad * c_pad + 6 * n_pad * c_pad,
        transcendentals=n_pad * c_pad,
        bytes_accessed=bytes_a + n_pad * c_pad * 2 + n_pad * c_pad * 4,
    )
    out_pad = pl.pallas_call(
        functools.partial(output_kernel, num_classes=c),
        out_shape=jax.ShapeDtypeStruct((n_pad, c_pad), jnp.float32),
        grid=grid,
        in_specs=[
            pl.BlockSpec((tm, tk), lambda i, k: (i, k)),       # A
            pl.BlockSpec((tk, c_pad), lambda i, k: (k, 0)),    # HW
            pl.BlockSpec((1, c_pad), lambda i, k: (0, 0)),      # b2
        ],
        out_specs=pl.BlockSpec((tm, c_pad), lambda i, k: (i, 0)),
        scratch_shapes=[pltpu.VMEM((tm, c_pad), jnp.float32)],
        compiler_params=cparams,
        cost_estimate=ce_out,
    )(a_p, hw, b2_p)

    return out_pad[:n, :c]


# ----------------------------- reference (JAX) ------------------------------ #

def gcn_reference(a_hat, x, w1, b1, w2, b2):
    h = jnp.maximum(a_hat @ (x @ w1) + b1, 0.0)
    z = a_hat @ (h @ w2) + b2
    return jax.nn.log_softmax(z, axis=1)


def glorot(key, shape):
    limit = np.sqrt(6.0 / (shape[0] + shape[1]))
    return jax.random.uniform(key, shape, jnp.float32, -limit, limit)


if __name__ == "__main__":
    # small synthetic graph: N nodes, F node features, H hidden, C classes
    N, F_IN, HID, C = 256, 32, 16, 7
    E = 1024

    key = jax.random.PRNGKey(0)
    k_x, k_e, k_w1, k_w2 = jax.random.split(key, 4)

    x = jax.random.normal(k_x, (N, F_IN), jnp.float32)                 # data.x
    edges = jax.random.randint(k_e, (2, E), 0, N)                      # data.edge_index
    edge_index = jnp.concatenate(
        [edges, jnp.stack([edges[1], edges[0]])], axis=1)              # undirected

    # GCNConv parameters (glorot weights, zero bias), deterministic
    w1 = glorot(k_w1, (F_IN, HID))
    b1 = jnp.zeros((1, HID), jnp.float32)
    w2 = glorot(k_w2, (HID, C))
    b2 = jnp.zeros((1, C), jnp.float32)

    out = gcn_forward(x, edge_index, w1, b1, w2, b2)
    out = jax.block_until_ready(out)

    a_hat_f32 = build_normalized_adjacency(edge_index, N)              # f32, unpadded
    ref = jax.block_until_ready(gcn_reference(a_hat_f32, x, w1, b1, w2, b2))

    # sanity: shape, rows are valid log-probabilities, matches f32 reference
    assert out.shape == (N, C)
    assert np.allclose(np.exp(np.asarray(out)).sum(axis=1), 1.0, atol=1e-4)
    assert np.max(np.abs(np.asarray(out) - np.asarray(ref))) < 0.1

    print("KERNEL_OK")
</pallas_src>

<mosaic_0001>
module attributes {stable_mosaic.version = 11 : i64} {
  func.func @hidden_kernel(%arg0: i32, %arg1: i32, %arg2: memref<128x256xbf16, #tpu.memory_space<vmem>>, %arg3: memref<256x128xbf16, #tpu.memory_space<vmem>>, %arg4: memref<128x128xbf16, #tpu.memory_space<vmem>>, %arg5: memref<1x128xf32, #tpu.memory_space<vmem>>, %arg6: memref<128x128xbf16, #tpu.memory_space<vmem>>, %arg7: memref<128x128xbf16, #tpu.memory_space<vmem>>, %arg8: memref<128x128xf32, #tpu.memory_space<vmem>>) attributes {dimension_semantics = [#tpu.dimension_semantics<parallel>, #tpu.dimension_semantics<arbitrary>], iteration_bounds = array<i64: 2, 1>, scalar_prefetch = 0 : i64, scratch_operands = 1 : i64, tpu.core_type = #tpu.core_type<tc>, window_params = [{transform_indices = @transform_0, window_bounds = array<i64: 128, 256>}, {transform_indices = @transform_1, window_bounds = array<i64: 256, 128>}, {pipeline_mode = #tpu.pipeline_mode<synchronous>, transform_indices = @transform_2, window_bounds = array<i64: 128, 128>}, {pipeline_mode = #tpu.pipeline_mode<synchronous>, transform_indices = @transform_3, window_bounds = array<i64: 1, 128>}, {pipeline_mode = #tpu.pipeline_mode<synchronous>, transform_indices = @transform_4, window_bounds = array<i64: 128, 128>}, {transform_indices = @transform_5, window_bounds = array<i64: 128, 128>}]} {
    %c0_i32 = arith.constant 0 : i32
    %0 = arith.cmpi eq, %arg1, %c0_i32 : i32
    %1 = arith.extui %0 : i1 to i32
    %c0_i32_0 = arith.constant 0 : i32
    %2 = arith.cmpi ne, %1, %c0_i32_0 : i32
    scf.if %2 {
      %cst_10 = arith.constant 0.000000e+00 : f32
      %12 = vector.broadcast %cst_10 : f32 to vector<128x128xf32>
      %c0_11 = arith.constant 0 : index
      %c0_12 = arith.constant 0 : index
      %13 = vector.load %arg8[%c0_11, %c0_12] : memref<128x128xf32, #tpu.memory_space<vmem>>, vector<128x128xf32>
      tpu.vector_store %arg8[%c0_11, %c0_12], %12 {strides = array<i32>} : memref<128x128xf32, #tpu.memory_space<vmem>>, vector<128x128xf32>,
    } else {
    }
    %c0 = arith.constant 0 : index
    %c0_1 = arith.constant 0 : index
    %3 = vector.load %arg8[%c0, %c0_1] : memref<128x128xf32, #tpu.memory_space<vmem>>, vector<128x128xf32>
    %c0_2 = arith.constant 0 : index
    %c0_3 = arith.constant 0 : index
    %4 = vector.load %arg2[%c0_2, %c0_3] : memref<128x256xbf16, #tpu.memory_space<vmem>>, vector<128x256xbf16>
    %c0_4 = arith.constant 0 : index
    %c0_5 = arith.constant 0 : index
    %5 = vector.load %arg3[%c0_4, %c0_5] : memref<256x128xbf16, #tpu.memory_space<vmem>>, vector<256x128xbf16>
    %cst = arith.constant dense<0.000000e+00> : vector<128x128xf32>
    %6 = tpu.matmul %4, %5, %cst {dimension_numbers = #tpu.dot_dimension_numbers<[1], [0], [0], [1], [0, 0, 1, 1], [], []>} : vector<128x256xbf16>, vector<256x128xbf16>, vector<128x128xf32> -> vector<128x128xf32>
    %7 = arith.addf %3, %6 : vector<128x128xf32>
    %c0_6 = arith.constant 0 : index
    %c0_7 = arith.constant 0 : index
    %8 = vector.load %arg8[%c0_6, %c0_7] : memref<128x128xf32, #tpu.memory_space<vmem>>, vector<128x128xf32>
    tpu.vector_store %arg8[%c0_6, %c0_7], %7 {strides = array<i32>} : memref<128x128xf32, #tpu.memory_space<vmem>>, vector<128x128xf32>,
    %c0_i32_8 = arith.constant 0 : i32
    %9 = arith.cmpi eq, %arg1, %c0_i32_8 : i32
    %10 = arith.extui %9 : i1 to i32
    %c0_i32_9 = arith.constant 0 : i32
    %11 = arith.cmpi ne, %10, %c0_i32_9 : i32
    scf.if %11 {
      %c0_10 = arith.constant 0 : index
      %c0_11 = arith.constant 0 : index
      %12 = vector.load %arg8[%c0_10, %c0_11] : memref<128x128xf32, #tpu.memory_space<vmem>>, vector<128x128xf32>
      %13 = arith.truncf %12 : vector<128x128xf32> to vector<128x128xbf16>
      %c0_12 = arith.constant 0 : index
      %c0_13 = arith.constant 0 : index
      %14 = vector.load %arg4[%c0_12, %c0_13] : memref<128x128xbf16, #tpu.memory_space<vmem>>, vector<128x128xbf16>
      %cst_14 = arith.constant dense<0.000000e+00> : vector<128x128xf32>
      %15 = tpu.matmul %13, %14, %cst_14 {dimension_numbers = #tpu.dot_dimension_numbers<[1], [0], [0], [1], [0, 0, 1, 1], [], []>} : vector<128x128xbf16>, vector<128x128xbf16>, vector<128x128xf32> -> vector<128x128xf32>
      %c0_15 = arith.constant 0 : index
      %c0_16 = arith.constant 0 : index
      %16 = vector.load %arg5[%c0_15, %c0_16] : memref<1x128xf32, #tpu.memory_space<vmem>>, vector<1x128xf32>
      %17 = vector.broadcast %16 : vector<1x128xf32> to vector<128x128xf32>
      %18 = arith.addf %15, %17 : vector<128x128xf32>
      %cst_17 = arith.constant 0.000000e+00 : f32
      %19 = vector.broadcast %cst_17 : f32 to vector<128x128xf32>
      %20 = arith.maximumf %18, %19 : vector<128x128xf32>
      %21 = arith.truncf %20 : vector<128x128xf32> to vector<128x128xbf16>
      %c0_18 = arith.constant 0 : index
      %c0_19 = arith.constant 0 : index
      %22 = vector.load %arg6[%c0_18, %c0_19] : memref<128x128xbf16, #tpu.memory_space<vmem>>, vector<128x128xbf16>
      %cst_20 = arith.constant dense<0.000000e+00> : vector<128x128xf32>
      %23 = tpu.matmul %21, %22, %cst_20 {dimension_numbers = #tpu.dot_dimension_numbers<[1], [0], [0], [1], [0, 0, 1, 1], [], []>} : vector<128x128xbf16>, vector<128x128xbf16>, vector<128x128xf32> -> vector<128x128xf32>
      %24 = arith.truncf %23 : vector<128x128xf32> to vector<128x128xbf16>
      %c0_21 = arith.constant 0 : index
      %c0_22 = arith.constant 0 : index
      %25 = vector.load %arg7[%c0_21, %c0_22] : memref<128x128xbf16, #tpu.memory_space<vmem>>, vector<128x128xbf16>
      tpu.vector_store %arg7[%c0_21, %c0_22], %24 {strides = array<i32>} : memref<128x128xbf16, #tpu.memory_space<vmem>>, vector<128x128xbf16>,
    } else {
    }
    return
  }
  func.func @transform_0(%arg0: i32, %arg1: i32) -> (i32, i32) {
    %c0_i32 = arith.constant 0 : i32
    return %arg0, %arg1 : i32, i32
  }
  func.func @transform_1(%arg0: i32, %arg1: i32) -> (i32, i32) {
    %c0_i32 = arith.constant 0 : i32
    %c0_i32_0 = arith.constant 0 : i32
    return %arg1, %c0_i32 : i32, i32
  }
  func.func @transform_2(%arg0: i32, %arg1: i32) -> (i32, i32) {
    %c0_i32 = arith.constant 0 : i32
    %c0_i32_0 = arith.constant 0 : i32
    %c0_i32_1 = arith.constant 0 : i32
    return %c0_i32, %c0_i32_0 : i32, i32
  }
  func.func @transform_3(%arg0: i32, %arg1: i32) -> (i32, i32) {
    %c0_i32 = arith.constant 0 : i32
    %c0_i32_0 = arith.constant 0 : i32
    %c0_i32_1 = arith.constant 0 : i32
    return %c0_i32, %c0_i32_0 : i32, i32
  }
  func.func @transform_4(%arg0: i32, %arg1: i32) -> (i32, i32) {
    %c0_i32 = arith.constant 0 : i32
    %c0_i32_0 = arith.constant 0 : i32
    %c0_i32_1 = arith.constant 0 : i32
    return %c0_i32, %c0_i32_0 : i32, i32
  }
  func.func @transform_5(%arg0: i32, %arg1: i32) -> (i32, i32) {
    %c0_i32 = arith.constant 0 : i32
    %c0_i32_0 = arith.constant 0 : i32
    return %arg0, %c0_i32 : i32, i32
  }
}

</mosaic_0001>

<llo_original>
// kernel: tpu_custom_call.1
$region0: #{tpu_custom_call.1}
  #allocation0 [shape = 'u32[]', space=smem, size = 0x4, offset = 0x4, fixed_abs, tag = 'smem constant byte address 0x4 - core index']
  #allocation1 [shape = 'u32[72,128]{1,0:T(1,128)}', space=vmem, size = 0x9000, scoped, tag = 'internal scratch']
  #allocation2 [shape = 'f32[128,128]{1,0:T(8,128)}', space=vmem, size = 0x10000, scoped, tag = 'scratch operand']
  %s0 = inlined_call_operand.hbm [shape: bf16[256,256], index: 0, kind: input, shape index: {}]
  %s1 = inlined_call_operand.hbm [shape: bf16[256,128], index: 1, kind: input, shape index: {}]
  %s2 = inlined_call_operand.hbm [shape: bf16[128,128], index: 2, kind: input, shape index: {}]
  %s3 = inlined_call_operand.vmem [shape: f32[1,128], index: 3, kind: input, shape index: {}]
  %s4 = inlined_call_operand.hbm [shape: bf16[128,128], index: 4, kind: input, shape index: {}]
  %s5 = inlined_call_operand.hbm [shape: bf16[256,128], index: 5, kind: output, shape index: {}]
  %s6 = sld [smem:[#allocation0]]
  $region77: #{tpu_custom_call.1} parent=0
    _
  %s8 = ssub.s32 1, %s6
  %s9 = scalar_select 0, %s8, %s6
  $region1: #{tpu_custom_call.1} parent=0
    #allocation3 [shape = 'u8[131072]{0}', space=vmem, size = 0x20000, scoped, tag = 'input window, operand 0']
    #allocation4 [shape = 's32[2]{0}', space=sflag, size = 0x8, scoped, tag = 'scoped memory for tpu_custom_call.1']
    #allocation5 [shape = 's32[2]{0}', space=sflag, size = 0x8, scoped, tag = 'scoped memory for tpu_custom_call.1']
    #allocation6 [shape = 'u8[65536]{0}', space=vmem, size = 0x10000, scoped, tag = 'input window, operand 1, single buffered']
    #allocation7 [shape = 's32[1]{0}', space=sflag, size = 0x4, scoped, tag = 'scoped memory for tpu_custom_call.1']
    #allocation8 [shape = 'u8[32768]{0}', space=vmem, size = 0x8000, scoped, tag = 'input window, operand 2, single buffered']
    #allocation9 [shape = 'u8[32768]{0}', space=vmem, size = 0x8000, scoped, tag = 'input window, operand 4, single buffered']
    #allocation10 [shape = 's32[1]{0}', space=sflag, size = 0x4, scoped, tag = 'scoped memory for tpu_custom_call.1']
    #allocation11 [shape = 'u8[65536]{0}', space=vmem, size = 0x10000, scoped, tag = 'output window, operand 0']
    %10 = vsyncpa [#allocation4], 0
    %s11 = scalar_lea.sflag [#allocation4], 1
    %12 = vsyncpa %s11, 0
    %13 = vsyncpa [#allocation7], 0
    %14 = vsyncpa [#allocation10], 0
    %15 = vsyncpa [#allocation5], 0
    %s16 = scalar_lea.sflag [#allocation5], 1
    %17 = vsyncpa %s16, 0
    loop: start=0, step=1, limit=4
    $region2: #{tpu_custom_call.1} parent=1 // loop_pre_header
      _
    $region3: #{tpu_custom_call.1} parent=1 // loop_header
      %s19 = sphi 0, %s23
      %p20 = scmp.ge.s32.totalorder %s19, 4
      %s26 = sphi 0, %s38
      %s27 = sphi 0, %s34
      %s28 = sphi 0, %s26
      %s29 = sphi 0, %s27
      %s30 = sphi 0, %s28
      %s31 = sphi 0, %s29
      %s43 = sphi 0, %s45
      %s46 = sphi 0, %s43
      %s47 = sphi 0, %s46
      %s63 = sphi 0, %s47
      %s69 = sphi 0, %s71
      %s72 = sphi 0, %s69
      %s73 = sphi 0, %s72
      %s89 = sphi 0, %s73
      %s93 = sphi 0, %s93
      %s95 = sphi 0, %s93
      %s96 = sphi 0, %s95
      %s110 = sphi 0, %s96
      %s114 = sphi 0, %s114
      %s116 = sphi 0, %s114
      %s117 = sphi 0, %s116
      %s131 = sphi 0, %s117
      %s135 = sphi 0, %s135
      %s137 = sphi 0, %s135
      %s138 = sphi 0, %s137
      %s152 = sphi 0, %s138
      %s158 = sphi 0, %s160
      %s161 = sphi 0, %s158
      %s162 = sphi 0, %s161
      %s178 = sphi 0, %s162
    $region4: #{tpu_custom_call.1} parent=1 // loop_header_branch
      %22 = sbr.rel (%p20) target = $region8
    $region5: #{tpu_custom_call.1} parent=1 // loop_body
      %s24 = ssub.s32 %s19, 1
      %s25 = ssub.s32 %s19, 2
      %s32 = sadd.s32 1, %s27
      %p33 = scmp.ge.s32.totalorder %s32, 1
      %s34 = scalar_select %p33, 0, %s32
      %s35 = sadd.s32 1, %s26
      %s36 = scalar_select %p33, %s35, %s26
      %p37 = scmp.ge.s32.totalorder %s36, 2
      %s38 = scalar_select %p37, 0, %s36
      %s39 = ssub.s32 %s26, %s38
      %s40 = ssub.s32 %s27, %s34
      %s41 = sor.u32 %s39, %s40
      %p42 = scmp.eq.s32.totalorder %s41, 0
      %s44 = sadd.s32 %s43, 1
      %s45 = scalar_select %p42, %s43, %s44
      %p48 = pneg %p42
      %p49 = scmp.eq.s32.totalorder %s19, 1
      %p50 = por %p48, %p49
      %p51 = scmp.ne.s32.totalorder %s43, %s46
      %p52 = scmp.eq.s32.totalorder %s19, 0
      %p53 = por %p51, %p52
      %p54 = scmp.ne.s32.totalorder %s43, %s46
      %p55 = scmp.eq.s32.totalorder %s24, 1
      %p56 = por %p54, %p55
      %p57 = scmp.ne.s32.totalorder %s46, %s47
      %p58 = scmp.eq.s32.totalorder %s24, 0
      %p59 = por %p57, %p58
      %p60 = scmp.ne.s32.totalorder %s46, %s47
      %p61 = scmp.eq.s32.totalorder %s25, 1
      %p62 = por %p60, %p61
      %p64 = scmp.ne.s32.totalorder %s47, %s63
      %p65 = scmp.eq.s32.totalorder %s25, 0
      %p66 = por %p64, %p65
      %s67 = ssub.s32 %s27, %s34
      %p68 = scmp.eq.s32.totalorder %s67, 0
      %s70 = sadd.s32 %s69, 1
      %s71 = scalar_select %p68, %s69, %s70
      %p74 = pneg %p68
      %p75 = scmp.eq.s32.totalorder %s19, 1
      %p76 = por %p74, %p75
      %p77 = scmp.ne.s32.totalorder %s69, %s72
      %p78 = scmp.eq.s32.totalorder %s19, 0
      %p79 = por %p77, %p78
      %p80 = scmp.ne.s32.totalorder %s69, %s72
      %p81 = scmp.eq.s32.totalorder %s24, 1
      %p82 = por %p80, %p81
      %p83 = scmp.ne.s32.totalorder %s72, %s73
      %p84 = scmp.eq.s32.totalorder %s24, 0
      %p85 = por %p83, %p84
      %p86 = scmp.ne.s32.totalorder %s72, %s73
      %p87 = scmp.eq.s32.totalorder %s25, 1
      %p88 = por %p86, %p87
      %p90 = scmp.ne.s32.totalorder %s73, %s89
      %p91 = scmp.eq.s32.totalorder %s25, 0
      %p92 = por %p90, %p91
      %s94 = sadd.s32 %s93, 1
      %p97 = scmp.eq.s32.totalorder %s19, 1
      %p98 = scmp.ne.s32.totalorder %s93, %s95
      %p99 = scmp.eq.s32.totalorder %s19, 0
      %p100 = por %p98, %p99
      %p101 = scmp.ne.s32.totalorder %s93, %s95
      %p102 = scmp.eq.s32.totalorder %s24, 1
      %p103 = por %p101, %p102
      %p104 = scmp.ne.s32.totalorder %s95, %s96
      %p105 = scmp.eq.s32.totalorder %s24, 0
      %p106 = por %p104, %p105
      %p107 = scmp.ne.s32.totalorder %s95, %s96
      %p108 = scmp.eq.s32.totalorder %s25, 1
      %p109 = por %p107, %p108
      %p111 = scmp.ne.s32.totalorder %s96, %s110
      %p112 = scmp.eq.s32.totalorder %s25, 0
      %p113 = por %p111, %p112
      %s115 = sadd.s32 %s114, 1
      %p118 = scmp.eq.s32.totalorder %s19, 1
      %p119 = scmp.ne.s32.totalorder %s114, %s116
      %p120 = scmp.eq.s32.totalorder %s19, 0
      %p121 = por %p119, %p120
      %p122 = scmp.ne.s32.totalorder %s114, %s116
      %p123 = scmp.eq.s32.totalorder %s24, 1
      %p124 = por %p122, %p123
      %p125 = scmp.ne.s32.totalorder %s116, %s117
      %p126 = scmp.eq.s32.totalorder %s24, 0
      %p127 = por %p125, %p126
      %p128 = scmp.ne.s32.totalorder %s116, %s117
      %p129 = scmp.eq.s32.totalorder %s25, 1
      %p130 = por %p128, %p129
      %p132 = scmp.ne.s32.totalorder %s117, %s131
      %p133 = scmp.eq.s32.totalorder %s25, 0
      %p134 = por %p132, %p133
      %s136 = sadd.s32 %s135, 1
      %p139 = scmp.eq.s32.totalorder %s19, 1
      %p140 = scmp.ne.s32.totalorder %s135, %s137
      %p141 = scmp.eq.s32.totalorder %s19, 0
      %p142 = por %p140, %p141
      %p143 = scmp.ne.s32.totalorder %s135, %s137
      %p144 = scmp.eq.s32.totalorder %s24, 1
      %p145 = por %p143, %p144
      %p146 = scmp.ne.s32.totalorder %s137, %s138
      %p147 = scmp.eq.s32.totalorder %s24, 0
      %p148 = por %p146, %p147
      %p149 = scmp.ne.s32.totalorder %s137, %s138
      %p150 = scmp.eq.s32.totalorder %s25, 1
      %p151 = por %p149, %p150
      %p153 = scmp.ne.s32.totalorder %s138, %s152
      %p154 = scmp.eq.s32.totalorder %s25, 0
      %p155 = por %p153, %p154
      %s156 = ssub.s32 %s26, %s38
      %p157 = scmp.eq.s32.totalorder %s156, 0
      %s159 = sadd.s32 %s158, 1
      %s160 = scalar_select %p157, %s158, %s159
      %p163 = pneg %p157
      %p164 = scmp.eq.s32.totalorder %s19, 1
      %p165 = por %p163, %p164
      %p166 = scmp.ne.s32.totalorder %s158, %s161
      %p167 = scmp.eq.s32.totalorder %s19, 0
      %p168 = por %p166, %p167
      %p169 = scmp.ne.s32.totalorder %s158, %s161
      %p170 = scmp.eq.s32.totalorder %s24, 1
      %p171 = por %p169, %p170
      %p172 = scmp.ne.s32.totalorder %s161, %s162
      %p173 = scmp.eq.s32.totalorder %s24, 0
      %p174 = por %p172, %p173
      %p175 = scmp.ne.s32.totalorder %s161, %s162
      %p176 = scmp.eq.s32.totalorder %s25, 1
      %p177 = por %p175, %p176
      %p179 = scmp.ne.s32.totalorder %s162, %s178
      %p180 = scmp.eq.s32.totalorder %s25, 0
      %p181 = por %p179, %p180
      %p182 = scmp.le.s32.totalorder 1, %s19
      %p183 = scmp.lt.s32.totalorder %s19, 3
      %p184 = pnand %p182, %p183
      %p185 = pneg %p184
      // Predicated region
      $region9: #{tpu_custom_call.1} parent=5 // pred_check
        _
      $region10: #{tpu_custom_call.1} parent=5 // pred_check_branch
        %187 = sbr.rel (%p184) target = $region12
      $region11: #{tpu_custom_call.1} parent=5 // pred_region
        %s188 = ssub.s32 %s19, 1
        // Predicated region
        $region13: #{tpu_custom_call.1} parent=11 // pred_check
          %p189 = pneg %p85
        $region14: #{tpu_custom_call.1} parent=11 // pred_check_branch
          %191 = sbr.rel (%p189) target = $region16
        $region15: #{tpu_custom_call.1} parent=11 // pred_region
          %s192 = smul.u32 32, %s29
          %194 = vsyncadd [#allocation7], 0
          %s195 = smul.addr %s192, 4
          %s196 = scalar_lea.hbm %s1, %s195
          %s197 = sshll.u32 %s196, 4
          %s198 = int_to_ptr.hbm [resolvable:$true] %s197
          %s199 = sshll.u32 [#allocation6], 4
          %s200 = int_to_ptr.vmem [resolvable:$true] %s199
          %205 = dma.hbm_to_vmem [thread:$0]  %s198, 2048, %s200, [#allocation7], 64, 64, 4
        $region16: #{tpu_custom_call.1} parent=11 // pred_fallthru
          _
        // Predicated region
        $region17: #{tpu_custom_call.1} parent=11 // pred_check
          %p206 = pneg %p106
        $region18: #{tpu_custom_call.1} parent=11 // pred_check_branch
          %208 = sbr.rel (%p206) target = $region20
        $region19: #{tpu_custom_call.1} parent=11 // pred_region
          %210 = vsyncadd [#allocation7], 0
          %s211 = sshll.u32 %s2, 4
          %s212 = int_to_ptr.hbm [resolvable:$true] %s211
          %s213 = sshll.u32 [#allocation8], 4
          %s214 = int_to_ptr.vmem [resolvable:$true] %s213
          %219 = dma.hbm_to_vmem [thread:$0]  %s212, 1024, %s214, [#allocation7], 64, 64, 4
        $region20: #{tpu_custom_call.1} parent=11 // pred_fallthru
          _
        // Predicated region
        $region21: #{tpu_custom_call.1} parent=11 // pred_check
          %p220 = pneg %p127
        $region22: #{tpu_custom_call.1} parent=11 // pred_check_branch
          %222 = sbr.rel (%p220) target = $region24
        $region23: #{tpu_custom_call.1} parent=11 // pred_region
          _
        $region24: #{tpu_custom_call.1} parent=11 // pred_fallthru
          _
        // Predicated region
        $region25: #{tpu_custom_call.1} parent=11 // pred_check
          %p223 = pneg %p148
        $region26: #{tpu_custom_call.1} parent=11 // pred_check_branch
          %225 = sbr.rel (%p223) target = $region28
        $region27: #{tpu_custom_call.1} parent=11 // pred_region
          %227 = vsyncadd [#allocation10], 0
          %s228 = sshll.u32 %s4, 4
          %s229 = int_to_ptr.hbm [resolvable:$true] %s228
          %s230 = sshll.u32 [#allocation9], 4
          %s231 = int_to_ptr.vmem [resolvable:$true] %s230
          %236 = dma.hbm_to_vmem [thread:$0]  %s229, 1024, %s231, [#allocation10], 64, 64, 4
        $region28: #{tpu_custom_call.1} parent=11 // pred_fallthru
          _
      $region12: #{tpu_custom_call.1} parent=5 // pred_fallthru
        _
      %p237 = scmp.lt.s32.totalorder %s19, 2
      // Predicated region
      $region29: #{tpu_custom_call.1} parent=5 // pred_check
        %p238 = pneg %p237
      $region30: #{tpu_custom_call.1} parent=5 // pred_check_branch
        %240 = sbr.rel (%p238) target = $region32
      $region31: #{tpu_custom_call.1} parent=5 // pred_region
        // Predicated region
        $region33: #{tpu_custom_call.1} parent=31 // pred_check
          %p241 = pneg %p53
        $region34: #{tpu_custom_call.1} parent=31 // pred_check_branch
          %243 = sbr.rel (%p241) target = $region36
        $region35: #{tpu_custom_call.1} parent=31 // pred_region
          %s244 = sand.u32 %s43, 1
          %s245 = scalar_lea.sflag [#allocation4], %s244
          %s246 = sand.u32 %s43, 1
          %s247 = smul.addr %s246, 128
          %s248 = scalar_lea.vmem [#allocation3], %s247
          %s249 = smul.u32 16, %s26
          %s250 = smul.u32 2, %s27
          %252 = vsyncadd %s245, 0
          %s253 = smul.addr %s249, 2
          %s254 = sadd.s32 %s250, %s253
          %s255 = smul.addr %s254, 4
          %s256 = scalar_lea.hbm %s0, %s255
          %s257 = sshll.u32 %s256, 4
          %s258 = int_to_ptr.hbm [resolvable:$true] %s257
          %s259 = sshll.u32 %s248, 4
          %s260 = int_to_ptr.vmem [resolvable:$true] %s259
          %265 = dma.hbm_to_vmem [thread:$0]  %s258, 2048, %s260, %s245, 128, 128, 8
        $region36: #{tpu_custom_call.1} parent=31 // pred_fallthru
          _
      $region32: #{tpu_custom_call.1} parent=5 // pred_fallthru
        _
      %p266 = scmp.le.s32.totalorder 1, %s19
      %p267 = scmp.lt.s32.totalorder %s19, 3
      %p268 = pnand %p266, %p267
      %p269 = pneg %p268
      // Predicated region
      $region37: #{tpu_custom_call.1} parent=5 // pred_check
        _
      $region38: #{tpu_custom_call.1} parent=5 // pred_check_branch
        %271 = sbr.rel (%p268) target = $region40
      $region39: #{tpu_custom_call.1} parent=5 // pred_region
        %s272 = ssub.s32 %s19, 1
        %s273 = sand.u32 %s46, 1
        %s274 = scalar_lea.sflag [#allocation4], %s273
        %s275 = sand.u32 %s46, 1
        %s276 = smul.addr %s275, 128
        %s277 = scalar_lea.vmem [#allocation3], %s276
        // Predicated region
        $region41: #{tpu_custom_call.1} parent=39 // pred_check
          %p278 = pneg %p59
        $region42: #{tpu_custom_call.1} parent=39 // pred_check_branch
          %280 = sbr.rel (%p278) target = $region44
        $region43: #{tpu_custom_call.1} parent=39 // pred_region
          %282 = dma.done %s274, 2048
        $region44: #{tpu_custom_call.1} parent=39 // pred_fallthru
          _
        // Predicated region
        $region45: #{tpu_custom_call.1} parent=39 // pred_check
          %p283 = pneg %p85
        $region46: #{tpu_custom_call.1} parent=39 // pred_check_branch
          %285 = sbr.rel (%p283) target = $region48
        $region47: #{tpu_custom_call.1} parent=39 // pred_region
          %287 = dma.done [#allocation7], 2048
        $region48: #{tpu_custom_call.1} parent=39 // pred_fallthru
          _
        // Predicated region
        $region49: #{tpu_custom_call.1} parent=39 // pred_check
          %p288 = pneg %p106
        $region50: #{tpu_custom_call.1} parent=39 // pred_check_branch
          %290 = sbr.rel (%p288) target = $region52
        $region51: #{tpu_custom_call.1} parent=39 // pred_region
          %292 = dma.done [#allocation7], 1024
        $region52: #{tpu_custom_call.1} parent=39 // pred_fallthru
          _
        // Predicated region
        $region53: #{tpu_custom_call.1} parent=39 // pred_check
          %p293 = pneg %p148
        $region54: #{tpu_custom_call.1} parent=39 // pred_check_branch
          %295 = sbr.rel (%p293) target = $region56
        $region55: #{tpu_custom_call.1} parent=39 // pred_region
          %297 = dma.done [#allocation10], 1024
        $region56: #{tpu_custom_call.1} parent=39 // pred_fallthru
          _
        %s298 = sand.u32 %s46, 1
        %s299 = scalar_lea.sflag [#allocation4], %s298
        %s300 = sand.u32 %s46, 1
        %s301 = smul.addr %s300, 128
        %s302 = scalar_lea.vmem [#allocation3], %s301
        %p303 = pneg %p59
        %p304 = pneg %p56
        %p305 = pneg %p85
        %p306 = pneg %p82
        %p307 = pneg %p106
        %p308 = pneg %p103
        %p309 = pneg %p127
        %p310 = pneg %p124
        %p311 = pneg %p148
        %p312 = pneg %p145
        %p313 = pneg %p174
        %p314 = pneg %p171
        %s315 = sand.u32 %s161, 1
        %s316 = scalar_lea.sflag [#allocation5], %s315
        %s317 = sand.u32 %s161, 1
        %s318 = smul.addr %s317, 64
        %s319 = scalar_lea.vmem [#allocation11], %s318
        %s320 = smul.u32 16, %s28
        %s321 = smul.u32 2, %s29
        %s322 = smul.u32 32, %s29
        %s323 = smul.u32 16, %s28
        %p324 = scmp.eq.s32.totalorder %s29, 0
        // Predicated region
        $region57: #{tpu_custom_call.1} parent=39 // pred_check
          %p325 = pneg %p324
        $region58: #{tpu_custom_call.1} parent=39 // pred_check_branch
          %327 = sbr.rel (%p325) target = $region60
        $region59: #{tpu_custom_call.1} parent=39 // pred_region
          %328 = vst [vmem:[#allocation2] sm:$0xff] 0.0
          %329 = vst [vmem:[#allocation2 + $0x8] sm:$0xff] 0.0
          %330 = vst [vmem:[#allocation2 + $0x10] sm:$0xff] 0.0
          %331 = vst [vmem:[#allocation2 + $0x18] sm:$0xff] 0.0
          %332 = vst [vmem:[#allocation2 + $0x20] sm:$0xff] 0.0
          %333 = vst [vmem:[#allocation2 + $0x28] sm:$0xff] 0.0
          %334 = vst [vmem:[#allocation2 + $0x30] sm:$0xff] 0.0
          %335 = vst [vmem:[#allocation2 + $0x38] sm:$0xff] 0.0
          %336 = vst [vmem:[#allocation2 + $0x40] sm:$0xff] 0.0
          %337 = vst [vmem:[#allocation2 + $0x48] sm:$0xff] 0.0
          %338 = vst [vmem:[#allocation2 + $0x50] sm:$0xff] 0.0
          %339 = vst [vmem:[#allocation2 + $0x58] sm:$0xff] 0.0
          %340 = vst [vmem:[#allocation2 + $0x60] sm:$0xff] 0.0
          %341 = vst [vmem:[#allocation2 + $0x68] sm:$0xff] 0.0
          %342 = vst [vmem:[#allocation2 + $0x70] sm:$0xff] 0.0
          %343 = vst [vmem:[#allocation2 + $0x78] sm:$0xff] 0.0
        $region60: #{tpu_custom_call.1} parent=39 // pred_fallthru
          _
        %v344 = vld [vmem:[#allocation2] sm:$0xff]
        %v345 = vld [vmem:[#allocation2 + $0x8] sm:$0xff]
        %v346 = vld [vmem:[#allocation2 + $0x10] sm:$0xff]
        %v347 = vld [vmem:[#allocation2 + $0x18] sm:$0xff]
        %v348 = vld [vmem:[#allocation2 + $0x20] sm:$0xff]
        %v349 = vld [vmem:[#allocation2 + $0x28] sm:$0xff]
        %v350 = vld [vmem:[#allocation2 + $0x30] sm:$0xff]
        %v351 = vld [vmem:[#allocation2 + $0x38] sm:$0xff]
        %v352 = vld [vmem:[#allocation2 + $0x40] sm:$0xff]
        %v353 = vld [vmem:[#allocation2 + $0x48] sm:$0xff]
        %v354 = vld [vmem:[#allocation2 + $0x50] sm:$0xff]
        %v355 = vld [vmem:[#allocation2 + $0x58] sm:$0xff]
        %v356 = vld [vmem:[#allocation2 + $0x60] sm:$0xff]
        %v357 = vld [vmem:[#allocation2 + $0x68] sm:$0xff]
        %v358 = vld [vmem:[#allocation2 + $0x70] sm:$0xff]
        %v359 = vld [vmem:[#allocation2 + $0x78] sm:$0xff]
        %v360 = vld [vmem:[%s277] sm:$0xff]
        %v361 = vld [vmem:[%s277 + $0x8] sm:$0xff]
        %v362 = vld [vmem:[%s277 + $0x10] sm:$0xff]
        %v363 = vld [vmem:[%s277 + $0x18] sm:$0xff]
        %v364 = vld [vmem:[%s277 + $0x20] sm:$0xff]
        %v365 = vld [vmem:[%s277 + $0x28] sm:$0xff]
        %v366 = vld [vmem:[%s277 + $0x30] sm:$0xff]
        %v367 = vld [vmem:[%s277 + $0x38] sm:$0xff]
        %v368 = vld [vmem:[%s277 + $0x40] sm:$0xff]
        %v369 = vld [vmem:[%s277 + $0x48] sm:$0xff]
        %v370 = vld [vmem:[%s277 + $0x50] sm:$0xff]
        %v371 = vld [vmem:[%s277 + $0x58] sm:$0xff]
        %v372 = vld [vmem:[%s277 + $0x60] sm:$0xff]
        %v373 = vld [vmem:[%s277 + $0x68] sm:$0xff]
        %v374 = vld [vmem:[%s277 + $0x70] sm:$0xff]
        %v375 = vld [vmem:[%s277 + $0x78] sm:$0xff]
        %v376 = vld [vmem:[#allocation6] sm:$0xf]
        %v377 = vld [vmem:[#allocation6 + $0x4] sm:$0xf]
        %v378 = vld [vmem:[#allocation6 + $0x8] sm:$0xf]
        %v379 = vld [vmem:[#allocation6 + $0xc] sm:$0xf]
        %v380 = vld [vmem:[#allocation6 + $0x10] sm:$0xf]
        %v381 = vld [vmem:[#allocation6 + $0x14] sm:$0xf]
        %v382 = vld [vmem:[#allocation6 + $0x18] sm:$0xf]
        %v383 = vld [vmem:[#allocation6 + $0x1c] sm:$0xf]
        %v384 = vld [vmem:[#allocation6 + $0x20] sm:$0xf]
        %v385 = vld [vmem:[#allocation6 + $0x24] sm:$0xf]
        %v386 = vld [vmem:[#allocation6 + $0x28] sm:$0xf]
        %v387 = vld [vmem:[#allocation6 + $0x2c] sm:$0xf]
        %v388 = vld [vmem:[#allocation6 + $0x30] sm:$0xf]
        %v389 = vld [vmem:[#allocation6 + $0x34] sm:$0xf]
        %v390 = vld [vmem:[#allocation6 + $0x38] sm:$0xf]
        %v391 = vld [vmem:[#allocation6 + $0x3c] sm:$0xf]
        %v392 = vld [vmem:[#allocation6 + $0x40] sm:$0xf]
        %v393 = vld [vmem:[#allocation6 + $0x44] sm:$0xf]
        %v394 = vld [vmem:[#allocation6 + $0x48] sm:$0xf]
        %v395 = vld [vmem:[#allocation6 + $0x4c] sm:$0xf]
        %v396 = vld [vmem:[#allocation6 + $0x50] sm:$0xf]
        %v397 = vld [vmem:[#allocation6 + $0x54] sm:$0xf]
        %v398 = vld [vmem:[#allocation6 + $0x58] sm:$0xf]
        %v399 = vld [vmem:[#allocation6 + $0x5c] sm:$0xf]
        %v400 = vld [vmem:[#allocation6 + $0x60] sm:$0xf]
        %v401 = vld [vmem:[#allocation6 + $0x64] sm:$0xf]
        %v402 = vld [vmem:[#allocation6 + $0x68] sm:$0xf]
        %v403 = vld [vmem:[#allocation6 + $0x6c] sm:$0xf]
        %v404 = vld [vmem:[#allocation6 + $0x70] sm:$0xf]
        %v405 = vld [vmem:[#allocation6 + $0x74] sm:$0xf]
        %v406 = vld [vmem:[#allocation6 + $0x78] sm:$0xf]
        %v407 = vld [vmem:[#allocation6 + $0x7c] sm:$0xf]
        %v424 = vunpack.c.l.b16 %v360
        %v425 = vunpack.c.h.b16 %v360
        %v426 = vunpack.c.l.b16 %v361
        %v427 = vunpack.c.h.b16 %v361
        %v428 = vunpack.c.l.b16 %v362
        %v429 = vunpack.c.h.b16 %v362
        %v430 = vunpack.c.l.b16 %v363
        %v431 = vunpack.c.h.b16 %v363
        %v432 = vunpack.c.l.b16 %v364
        %v433 = vunpack.c.h.b16 %v364
        %v434 = vunpack.c.l.b16 %v365
        %v435 = vunpack.c.h.b16 %v365
        %v436 = vunpack.c.l.b16 %v366
        %v437 = vunpack.c.h.b16 %v366
        %v438 = vunpack.c.l.b16 %v367
        %v439 = vunpack.c.h.b16 %v367
        %v440 = vunpack.c.l.b16 %v368
        %v441 = vunpack.c.h.b16 %v368
        %v442 = vunpack.c.l.b16 %v369
        %v443 = vunpack.c.h.b16 %v369
        %v444 = vunpack.c.l.b16 %v370
        %v445 = vunpack.c.h.b16 %v370
        %v446 = vunpack.c.l.b16 %v371
        %v447 = vunpack.c.h.b16 %v371
        %v448 = vunpack.c.l.b16 %v372
        %v449 = vunpack.c.h.b16 %v372
        %v450 = vunpack.c.l.b16 %v373
        %v451 = vunpack.c.h.b16 %v373
        %v452 = vunpack.c.l.b16 %v374
        %v453 = vunpack.c.h.b16 %v374
        %v454 = vunpack.c.l.b16 %v375
        %v455 = vunpack.c.h.b16 %v375
        %v456 = vpack.c.b16 %v426, %v424
        %v457 = vpack.c.b16 %v427, %v425
        %v458 = vpack.c.b16 %v430, %v428
        %v459 = vpack.c.b16 %v431, %v429
        %v460 = vpack.c.b16 %v434, %v432
        %v461 = vpack.c.b16 %v435, %v433
        %v462 = vpack.c.b16 %v438, %v436
        %v463 = vpack.c.b16 %v439, %v437
        %v464 = vpack.c.b16 %v442, %v440
        %v465 = vpack.c.b16 %v443, %v441
        %v466 = vpack.c.b16 %v446, %v444
        %v467 = vpack.c.b16 %v447, %v445
        %v468 = vpack.c.b16 %v450, %v448
        %v469 = vpack.c.b16 %v451, %v449
        %v470 = vpack.c.b16 %v454, %v452
        %v471 = vpack.c.b16 %v455, %v453
        %v520 = vunpack.c.l.b16 %v376
        %v521 = vunpack.c.l.b16 %v377
        %v522 = vunpack.c.l.b16 %v378
        %v523 = vunpack.c.l.b16 %v379
        %v524 = vunpack.c.l.b16 %v380
        %v525 = vunpack.c.l.b16 %v381
        %v526 = vunpack.c.l.b16 %v382
        %v527 = vunpack.c.l.b16 %v383
        %v528 = vunpack.c.l.b16 %v384
        %v529 = vunpack.c.l.b16 %v385
        %v530 = vunpack.c.l.b16 %v386
        %v531 = vunpack.c.l.b16 %v387
        %v532 = vunpack.c.l.b16 %v388
        %v533 = vunpack.c.l.b16 %v389
        %v534 = vunpack.c.l.b16 %v390
        %v535 = vunpack.c.l.b16 %v391
        %v536 = vunpack.c.l.b16 %v392
        %v537 = vunpack.c.l.b16 %v393
        %v538 = vunpack.c.l.b16 %v394
        %v539 = vunpack.c.l.b16 %v395
        %v540 = vunpack.c.l.b16 %v396
        %v541 = vunpack.c.l.b16 %v397
        %v542 = vunpack.c.l.b16 %v398
        %v543 = vunpack.c.l.b16 %v399
        %v544 = vunpack.c.l.b16 %v400
        %v545 = vunpack.c.l.b16 %v401
        %v546 = vunpack.c.l.b16 %v402
        %v547 = vunpack.c.l.b16 %v403
        %v548 = vunpack.c.l.b16 %v404
        %v549 = vunpack.c.l.b16 %v405
        %v550 = vunpack.c.l.b16 %v406
        %v551 = vunpack.c.l.b16 %v407
        %v552 = vpack.c.b16 %v521, %v520
        %v553 = vpack.c.b16 %v523, %v522
        %v554 = vpack.c.b16 %v525, %v524
        %v555 = vpack.c.b16 %v527, %v526
        %v556 = vpack.c.b16 %v529, %v528
        %v557 = vpack.c.b16 %v531, %v530
        %v558 = vpack.c.b16 %v533, %v532
        %v559 = vpack.c.b16 %v535, %v534
        %v560 = vpack.c.b16 %v537, %v536
        %v561 = vpack.c.b16 %v539, %v538
        %v562 = vpack.c.b16 %v541, %v540
        %v563 = vpack.c.b16 %v543, %v542
        %v564 = vpack.c.b16 %v545, %v544
        %v565 = vpack.c.b16 %v547, %v546
        %v566 = vpack.c.b16 %v549, %v548
        %v567 = vpack.c.b16 %v551, %v550
        %584 = vmatpush.bf16.msra.mxu0 %v559
        %585 = vmatpush.bf16.msra.mxu0 %v558
        %586 = vmatpush.bf16.msra.mxu0 %v557
        %587 = vmatpush.bf16.msra.mxu0 %v556
        %588 = vmatpush.bf16.msra.mxu0 %v555
        %589 = vmatpush.bf16.msra.mxu0 %v554
        %590 = vmatpush.bf16.msra.mxu0 %v553
        %591 = vmatpush.bf16.msra.mxu0 %v552
        %592 = vmatmul.bf16.gmra.mxu0 %v456
        %v593 = vpop.f32.mrf.mxu0
        %v594 = vadd.f32 0.0, %v593
        %v595 = vpop.f32.mrf.mxu0
        %v596 = vadd.f32 0.0, %v595
        %597 = vmatmul.bf16.gmra.mxu0 %v458
        %v598 = vpop.f32.mrf.mxu0
        %v599 = vadd.f32 0.0, %v598
        %v600 = vpop.f32.mrf.mxu0
        %v601 = vadd.f32 0.0, %v600
        %602 = vmatmul.bf16.gmra.mxu0 %v460
        %v603 = vpop.f32.mrf.mxu0
        %v604 = vadd.f32 0.0, %v603
        %v605 = vpop.f32.mrf.mxu0
        %v606 = vadd.f32 0.0, %v605
        %607 = vmatmul.bf16.gmra.mxu0 %v462
        %v608 = vpop.f32.mrf.mxu0
        %v609 = vadd.f32 0.0, %v608
        %v610 = vpop.f32.mrf.mxu0
        %v611 = vadd.f32 0.0, %v610
        %612 = vmatmul.bf16.gmra.mxu0 %v464
        %v613 = vpop.f32.mrf.mxu0
        %v614 = vadd.f32 0.0, %v613
        %v615 = vpop.f32.mrf.mxu0
        %v616 = vadd.f32 0.0, %v615
        %617 = vmatmul.bf16.gmra.mxu0 %v466
        %v618 = vpop.f32.mrf.mxu0
        %v619 = vadd.f32 0.0, %v618
        %v620 = vpop.f32.mrf.mxu0
        %v621 = vadd.f32 0.0, %v620
        %622 = vmatmul.bf16.gmra.mxu0 %v468
        %v623 = vpop.f32.mrf.mxu0
        %v624 = vadd.f32 0.0, %v623
        %v625 = vpop.f32.mrf.mxu0
        %v626 = vadd.f32 0.0, %v625
        %627 = vmatmul.bf16.gmra.mxu0 %v470
        %v628 = vpop.f32.mrf.mxu0
        %v629 = vadd.f32 0.0, %v628
        %v630 = vpop.f32.mrf.mxu0
        %v631 = vadd.f32 0.0, %v630
        %632 = vdwg.mxu0
        %633 = vmatpush.bf16.msra.mxu0 %v567
        %634 = vmatpush.bf16.msra.mxu0 %v566
        %635 = vmatpush.bf16.msra.mxu0 %v565
        %636 = vmatpush.bf16.msra.mxu0 %v564
        %637 = vmatpush.bf16.msra.mxu0 %v563
        %638 = vmatpush.bf16.msra.mxu0 %v562
        %639 = vmatpush.bf16.msra.mxu0 %v561
        %640 = vmatpush.bf16.msra.mxu0 %v560
        %641 = vmatmul.bf16.gmra.mxu0 %v457
        %v642 = vpop.f32.mrf.mxu0
        %v643 = vadd.f32 %v594, %v642
        %v644 = vpop.f32.mrf.mxu0
        %v645 = vadd.f32 %v596, %v644
        %646 = vmatmul.bf16.gmra.mxu0 %v459
        %v647 = vpop.f32.mrf.mxu0
        %v648 = vadd.f32 %v599, %v647
        %v649 = vpop.f32.mrf.mxu0
        %v650 = vadd.f32 %v601, %v649
        %651 = vmatmul.bf16.gmra.mxu0 %v461
        %v652 = vpop.f32.mrf.mxu0
        %v653 = vadd.f32 %v604, %v652
        %v654 = vpop.f32.mrf.mxu0
        %v655 = vadd.f32 %v606, %v654
        %656 = vmatmul.bf16.gmra.mxu0 %v463
        %v657 = vpop.f32.mrf.mxu0
        %v658 = vadd.f32 %v609, %v657
        %v659 = vpop.f32.mrf.mxu0
        %v660 = vadd.f32 %v611, %v659
        %661 = vmatmul.bf16.gmra.mxu0 %v465
        %v662 = vpop.f32.mrf.mxu0
        %v663 = vadd.f32 %v614, %v662
        %v664 = vpop.f32.mrf.mxu0
        %v665 = vadd.f32 %v616, %v664
        %666 = vmatmul.bf16.gmra.mxu0 %v467
        %v667 = vpop.f32.mrf.mxu0
        %v668 = vadd.f32 %v619, %v667
        %v669 = vpop.f32.mrf.mxu0
        %v670 = vadd.f32 %v621, %v669
        %671 = vmatmul.bf16.gmra.mxu0 %v469
        %v672 = vpop.f32.mrf.mxu0
        %v673 = vadd.f32 %v624, %v672
        %v674 = vpop.f32.mrf.mxu0
        %v675 = vadd.f32 %v626, %v674
        %676 = vmatmul.bf16.gmra.mxu0 %v471
        %v677 = vpop.f32.mrf.mxu0
        %v678 = vadd.f32 %v629, %v677
        %v679 = vpop.f32.mrf.mxu0
        %v680 = vadd.f32 %v631, %v679
        %681 = vdwg.mxu0
        %v682 = vadd.f32 %v344, %v643
        %v683 = vadd.f32 %v345, %v645
        %v684 = vadd.f32 %v346, %v648
        %v685 = vadd.f32 %v347, %v650
        %v686 = vadd.f32 %v348, %v653
        %v687 = vadd.f32 %v349, %v655
        %v688 = vadd.f32 %v350, %v658
        %v689 = vadd.f32 %v351, %v660
        %v690 = vadd.f32 %v352, %v663
        %v691 = vadd.f32 %v353, %v665
        %v692 = vadd.f32 %v354, %v668
        %v693 = vadd.f32 %v355, %v670
        %v694 = vadd.f32 %v356, %v673
        %v695 = vadd.f32 %v357, %v675
        %v696 = vadd.f32 %v358, %v678
        %v697 = vadd.f32 %v359, %v680
        %698 = vst [vmem:[#allocation2] sm:$0xff] %v682
        %699 = vst [vmem:[#allocation2 + $0x8] sm:$0xff] %v683
        %700 = vst [vmem:[#allocation2 + $0x10] sm:$0xff] %v684
        %701 = vst [vmem:[#allocation2 + $0x18] sm:$0xff] %v685
        %702 = vst [vmem:[#allocation2 + $0x20] sm:$0xff] %v686
        %703 = vst [vmem:[#allocation2 + $0x28] sm:$0xff] %v687
        %704 = vst [vmem:[#allocation2 + $0x30] sm:$0xff] %v688
        %705 = vst [vmem:[#allocation2 + $0x38] sm:$0xff] %v689
        %706 = vst [vmem:[#allocation2 + $0x40] sm:$0xff] %v690
        %707 = vst [vmem:[#allocation2 + $0x48] sm:$0xff] %v691
        %708 = vst [vmem:[#allocation2 + $0x50] sm:$0xff] %v692
        %709 = vst [vmem:[#allocation2 + $0x58] sm:$0xff] %v693
        %710 = vst [vmem:[#allocation2 + $0x60] sm:$0xff] %v694
        %711 = vst [vmem:[#allocation2 + $0x68] sm:$0xff] %v695
        %712 = vst [vmem:[#allocation2 + $0x70] sm:$0xff] %v696
        %713 = vst [vmem:[#allocation2 + $0x78] sm:$0xff] %v697
        // Predicated region
        $region61: #{tpu_custom_call.1} parent=39 // pred_check
          %p714 = pneg %p324
        $region62: #{tpu_custom_call.1} parent=39 // pred_check_branch
          %716 = sbr.rel (%p714) target = $region64
        $region63: #{tpu_custom_call.1} parent=39 // pred_region
          %v717 = vld [vmem:[#allocation2] sm:$0xff]
          %v718 = vld [vmem:[#allocation2 + $0x8] sm:$0xff]
          %v719 = vld [vmem:[#allocation2 + $0x10] sm:$0xff]
          %v720 = vld [vmem:[#allocation2 + $0x18] sm:$0xff]
          %v721 = vld [vmem:[#allocation2 + $0x20] sm:$0xff]
          %v722 = vld [vmem:[#allocation2 + $0x28] sm:$0xff]
          %v723 = vld [vmem:[#allocation2 + $0x30] sm:$0xff]
          %v724 = vld [vmem:[#allocation2 + $0x38] sm:$0xff]
          %v725 = vld [vmem:[#allocation2 + $0x40] sm:$0xff]
          %v726 = vld [vmem:[#allocation2 + $0x48] sm:$0xff]
          %v727 = vld [vmem:[#allocation2 + $0x50] sm:$0xff]
          %v728 = vld [vmem:[#allocation2 + $0x58] sm:$0xff]
          %v729 = vld [vmem:[#allocation2 + $0x60] sm:$0xff]
          %v730 = vld [vmem:[#allocation2 + $0x68] sm:$0xff]
          %v731 = vld [vmem:[#allocation2 + $0x70] sm:$0xff]
          %v732 = vld [vmem:[#allocation2 + $0x78] sm:$0xff]
          %v733 = vpack.c.bf16 %v718, %v717
          %v734 = vpack.c.bf16 %v720, %v719
          %v735 = vpack.c.bf16 %v722, %v721
          %v736 = vpack.c.bf16 %v724, %v723
          %v737 = vpack.c.bf16 %v726, %v725
          %v738 = vpack.c.bf16 %v728, %v727
          %v739 = vpack.c.bf16 %v730, %v729
          %v740 = vpack.c.bf16 %v732, %v731
          %v741 = vld [vmem:[#allocation8] sm:$0xf]
          %v742 = vld [vmem:[#allocation8 + $0x4] sm:$0xf]
          %v743 = vld [vmem:[#allocation8 + $0x8] sm:$0xf]
          %v744 = vld [vmem:[#allocation8 + $0xc] sm:$0xf]
          %v745 = vld [vmem:[#allocation8 + $0x10] sm:$0xf]
          %v746 = vld [vmem:[#allocation8 + $0x14] sm:$0xf]
          %v747 = vld [vmem:[#allocation8 + $0x18] sm:$0xf]
          %v748 = vld [vmem:[#allocation8 + $0x1c] sm:$0xf]
          %v749 = vld [vmem:[#allocation8 + $0x20] sm:$0xf]
          %v750 = vld [vmem:[#allocation8 + $0x24] sm:$0xf]
          %v751 = vld [vmem:[#allocation8 + $0x28] sm:$0xf]
          %v752 = vld [vmem:[#allocation8 + $0x2c] sm:$0xf]
          %v753 = vld [vmem:[#allocation8 + $0x30] sm:$0xf]
          %v754 = vld [vmem:[#allocation8 + $0x34] sm:$0xf]
          %v755 = vld [vmem:[#allocation8 + $0x38] sm:$0xf]
          %v756 = vld [vmem:[#allocation8 + $0x3c] sm:$0xf]
          %v757 = vld [vmem:[%s3] sm:$0x1]
          %v759 = vperm.slane %v757, 0
          %v777 = vunpack.c.l.b16 %v741
          %v778 = vunpack.c.l.b16 %v742
          %v779 = vunpack.c.l.b16 %v743
          %v780 = vunpack.c.l.b16 %v744
          %v781 = vunpack.c.l.b16 %v745
          %v782 = vunpack.c.l.b16 %v746
          %v783 = vunpack.c.l.b16 %v747
          %v784 = vunpack.c.l.b16 %v748
          %v785 = vunpack.c.l.b16 %v749
          %v786 = vunpack.c.l.b16 %v750
          %v787 = vunpack.c.l.b16 %v751
          %v788 = vunpack.c.l.b16 %v752
          %v789 = vunpack.c.l.b16 %v753
          %v790 = vunpack.c.l.b16 %v754
          %v791 = vunpack.c.l.b16 %v755
          %v792 = vunpack.c.l.b16 %v756
          %v793 = vpack.c.b16 %v778, %v777
          %v794 = vpack.c.b16 %v780, %v779
          %v795 = vpack.c.b16 %v782, %v781
          %v796 = vpack.c.b16 %v784, %v783
          %v797 = vpack.c.b16 %v786, %v785
          %v798 = vpack.c.b16 %v788, %v787
          %v799 = vpack.c.b16 %v790, %v789
          %v800 = vpack.c.b16 %v792, %v791
          %809 = vmatpush.bf16.msra.mxu0 %v800
          %810 = vmatpush.bf16.msra.mxu0 %v799
          %811 = vmatpush.bf16.msra.mxu0 %v798
          %812 = vmatpush.bf16.msra.mxu0 %v797
          %813 = vmatpush.bf16.msra.mxu0 %v796
          %814 = vmatpush.bf16.msra.mxu0 %v795
          %815 = vmatpush.bf16.msra.mxu0 %v794
          %816 = vmatpush.bf16.msra.mxu0 %v793
          %817 = vmatmul.bf16.gmra.mxu0 %v733
          %v818 = vpop.f32.mrf.mxu0
          %v819 = vadd.f32 %v759, %v818
          %v820 = vpop.f32.mrf.mxu0
          %v821 = vadd.f32 %v759, %v820
          %822 = vmatmul.bf16.gmra.mxu0 %v734
          %v823 = vpop.f32.mrf.mxu0
          %v824 = vadd.f32 %v759, %v823
          %v825 = vpop.f32.mrf.mxu0
          %v826 = vadd.f32 %v759, %v825
          %827 = vmatmul.bf16.gmra.mxu0 %v735
          %v828 = vpop.f32.mrf.mxu0
          %v829 = vadd.f32 %v759, %v828
          %v830 = vpop.f32.mrf.mxu0
          %v831 = vadd.f32 %v759, %v830
          %832 = vmatmul.bf16.gmra.mxu0 %v736
          %v833 = vpop.f32.mrf.mxu0
          %v834 = vadd.f32 %v759, %v833
          %v835 = vpop.f32.mrf.mxu0
          %v836 = vadd.f32 %v759, %v835
          %837 = vmatmul.bf16.gmra.mxu0 %v737
          %v838 = vpop.f32.mrf.mxu0
          %v839 = vadd.f32 %v759, %v838
          %v840 = vpop.f32.mrf.mxu0
          %v841 = vadd.f32 %v759, %v840
          %842 = vmatmul.bf16.gmra.mxu0 %v738
          %v843 = vpop.f32.mrf.mxu0
          %v844 = vadd.f32 %v759, %v843
          %v845 = vpop.f32.mrf.mxu0
          %v846 = vadd.f32 %v759, %v845
          %847 = vmatmul.bf16.gmra.mxu0 %v739
          %v848 = vpop.f32.mrf.mxu0
          %v849 = vadd.f32 %v759, %v848
          %v850 = vpop.f32.mrf.mxu0
          %v851 = vadd.f32 %v759, %v850
          %852 = vmatmul.bf16.gmra.mxu0 %v740
          %v853 = vpop.f32.mrf.mxu0
          %v854 = vadd.f32 %v759, %v853
          %v855 = vpop.f32.mrf.mxu0
          %v856 = vadd.f32 %v759, %v855
          %857 = vdwg.mxu0
          %v858 = vmax.f32 %v819, 0.0
          %v859 = vmax.f32 %v821, 0.0
          %v860 = vmax.f32 %v824, 0.0
          %v861 = vmax.f32 %v826, 0.0
          %v862 = vmax.f32 %v829, 0.0
          %v863 = vmax.f32 %v831, 0.0
          %v864 = vmax.f32 %v834, 0.0
          %v865 = vmax.f32 %v836, 0.0
          %v866 = vmax.f32 %v839, 0.0
          %v867 = vmax.f32 %v841, 0.0
          %v868 = vmax.f32 %v844, 0.0
          %v869 = vmax.f32 %v846, 0.0
          %v870 = vmax.f32 %v849, 0.0
          %v871 = vmax.f32 %v851, 0.0
          %v872 = vmax.f32 %v854, 0.0
          %v873 = vmax.f32 %v856, 0.0
          %v874 = vpack.c.bf16 %v859, %v858
          %v875 = vpack.c.bf16 %v861, %v860
          %v876 = vpack.c.bf16 %v863, %v862
          %v877 = vpack.c.bf16 %v865, %v864
          %v878 = vpack.c.bf16 %v867, %v866
          %v879 = vpack.c.bf16 %v869, %v868
          %v880 = vpack.c.bf16 %v871, %v870
          %v881 = vpack.c.bf16 %v873, %v872
          %v882 = vld [vmem:[#allocation9] sm:$0xf]
          %v883 = vld [vmem:[#allocation9 + $0x4] sm:$0xf]
          %v884 = vld [vmem:[#allocation9 + $0x8] sm:$0xf]
          %v885 = vld [vmem:[#allocation9 + $0xc] sm:$0xf]
          %v886 = vld [vmem:[#allocation9 + $0x10] sm:$0xf]
          %v887 = vld [vmem:[#allocation9 + $0x14] sm:$0xf]
          %v888 = vld [vmem:[#allocation9 + $0x18] sm:$0xf]
          %v889 = vld [vmem:[#allocation9 + $0x1c] sm:$0xf]
          %v890 = vld [vmem:[#allocation9 + $0x20] sm:$0xf]
          %v891 = vld [vmem:[#allocation9 + $0x24] sm:$0xf]
          %v892 = vld [vmem:[#allocation9 + $0x28] sm:$0xf]
          %v893 = vld [vmem:[#allocation9 + $0x2c] sm:$0xf]
          %v894 = vld [vmem:[#allocation9 + $0x30] sm:$0xf]
          %v895 = vld [vmem:[#allocation9 + $0x34] sm:$0xf]
          %v896 = vld [vmem:[#allocation9 + $0x38] sm:$0xf]
          %v897 = vld [vmem:[#allocation9 + $0x3c] sm:$0xf]
          %v914 = vunpack.c.l.b16 %v882
          %v915 = vunpack.c.l.b16 %v883
          %v916 = vunpack.c.l.b16 %v884
          %v917 = vunpack.c.l.b16 %v885
          %v918 = vunpack.c.l.b16 %v886
          %v919 = vunpack.c.l.b16 %v887
          %v920 = vunpack.c.l.b16 %v888
          %v921 = vunpack.c.l.b16 %v889
          %v922 = vunpack.c.l.b16 %v890
          %v923 = vunpack.c.l.b16 %v891
          %v924 = vunpack.c.l.b16 %v892
          %v925 = vunpack.c.l.b16 %v893
          %v926 = vunpack.c.l.b16 %v894
          %v927 = vunpack.c.l.b16 %v895
          %v928 = vunpack.c.l.b16 %v896
          %v929 = vunpack.c.l.b16 %v897
          %v930 = vpack.c.b16 %v915, %v914
          %v931 = vpack.c.b16 %v917, %v916
          %v932 = vpack.c.b16 %v919, %v918
          %v933 = vpack.c.b16 %v921, %v920
          %v934 = vpack.c.b16 %v923, %v922
          %v935 = vpack.c.b16 %v925, %v924
          %v936 = vpack.c.b16 %v927, %v926
          %v937 = vpack.c.b16 %v929, %v928
          %946 = vmatpush.bf16.msra.mxu0 %v937
          %947 = vmatpush.bf16.msra.mxu0 %v936
          %948 = vmatpush.bf16.msra.mxu0 %v935
          %949 = vmatpush.bf16.msra.mxu0 %v934
          %950 = vmatpush.bf16.msra.mxu0 %v933
          %951 = vmatpush.bf16.msra.mxu0 %v932
          %952 = vmatpush.bf16.msra.mxu0 %v931
          %953 = vmatpush.bf16.msra.mxu0 %v930
          %954 = vmatmul.bf16.gmra.mxu0 %v874
          %v955 = vpop.f32.mrf.mxu0
          %v956 = vadd.f32 0.0, %v955
          %v957 = vpop.f32.mrf.mxu0
          %v958 = vadd.f32 0.0, %v957
          %959 = vmatmul.bf16.gmra.mxu0 %v875
          %v960 = vpop.f32.mrf.mxu0
          %v961 = vadd.f32 0.0, %v960
          %v962 = vpop.f32.mrf.mxu0
          %v963 = vadd.f32 0.0, %v962
          %964 = vmatmul.bf16.gmra.mxu0 %v876
          %v965 = vpop.f32.mrf.mxu0
          %v966 = vadd.f32 0.0, %v965
          %v967 = vpop.f32.mrf.mxu0
          %v968 = vadd.f32 0.0, %v967
          %969 = vmatmul.bf16.gmra.mxu0 %v877
          %v970 = vpop.f32.mrf.mxu0
          %v971 = vadd.f32 0.0, %v970
          %v972 = vpop.f32.mrf.mxu0
          %v973 = vadd.f32 0.0, %v972
          %974 = vmatmul.bf16.gmra.mxu0 %v878
          %v975 = vpop.f32.mrf.mxu0
          %v976 = vadd.f32 0.0, %v975
          %v977 = vpop.f32.mrf.mxu0
          %v978 = vadd.f32 0.0, %v977
          %979 = vmatmul.bf16.gmra.mxu0 %v879
          %v980 = vpop.f32.mrf.mxu0
          %v981 = vadd.f32 0.0, %v980
          %v982 = vpop.f32.mrf.mxu0
          %v983 = vadd.f32 0.0, %v982
          %984 = vmatmul.bf16.gmra.mxu0 %v880
          %v985 = vpop.f32.mrf.mxu0
          %v986 = vadd.f32 0.0, %v985
          %v987 = vpop.f32.mrf.mxu0
          %v988 = vadd.f32 0.0, %v987
          %989 = vmatmul.bf16.gmra.mxu0 %v881
          %v990 = vpop.f32.mrf.mxu0
          %v991 = vadd.f32 0.0, %v990
          %v992 = vpop.f32.mrf.mxu0
          %v993 = vadd.f32 0.0, %v992
          %994 = vdwg.mxu0
          %v995 = vpack.c.bf16 %v956, %v956
          %v996 = vpack.c.bf16 %v958, %v958
          %v997 = vpack.c.bf16 %v961, %v961
          %v998 = vpack.c.bf16 %v963, %v963
          %v999 = vpack.c.bf16 %v966, %v966
          %v1000 = vpack.c.bf16 %v968, %v968
          %v1001 = vpack.c.bf16 %v971, %v971
          %v1002 = vpack.c.bf16 %v973, %v973
          %v1003 = vpack.c.bf16 %v976, %v976
          %v1004 = vpack.c.bf16 %v978, %v978
          %v1005 = vpack.c.bf16 %v981, %v981
          %v1006 = vpack.c.bf16 %v983, %v983
          %v1007 = vpack.c.bf16 %v986, %v986
          %v1008 = vpack.c.bf16 %v988, %v988
          %v1009 = vpack.c.bf16 %v991, %v991
          %v1010 = vpack.c.bf16 %v993, %v993
          %1011 = vst [vmem:[%s319] sm:$0xf] %v995
          %1012 = vst [vmem:[%s319 + $0x4] sm:$0xf] %v996
          %1013 = vst [vmem:[%s319 + $0x8] sm:$0xf] %v997
          %1014 = vst [vmem:[%s319 + $0xc] sm:$0xf] %v998
          %1015 = vst [vmem:[%s319 + $0x10] sm:$0xf] %v999
          %1016 = vst [vmem:[%s319 + $0x14] sm:$0xf] %v1000
          %1017 = vst [vmem:[%s319 + $0x18] sm:$0xf] %v1001
          %1018 = vst [vmem:[%s319 + $0x1c] sm:$0xf] %v1002
          %1019 = vst [vmem:[%s319 + $0x20] sm:$0xf] %v1003
          %1020 = vst [vmem:[%s319 + $0x24] sm:$0xf] %v1004
          %1021 = vst [vmem:[%s319 + $0x28] sm:$0xf] %v1005
          %1022 = vst [vmem:[%s319 + $0x2c] sm:$0xf] %v1006
          %1023 = vst [vmem:[%s319 + $0x30] sm:$0xf] %v1007
          %1024 = vst [vmem:[%s319 + $0x34] sm:$0xf] %v1008
          %1025 = vst [vmem:[%s319 + $0x38] sm:$0xf] %v1009
          %1026 = vst [vmem:[%s319 + $0x3c] sm:$0xf] %v1010
        $region64: #{tpu_custom_call.1} parent=39 // pred_fallthru
          _
        %s1027 = sand.u32 %s161, 1
        %s1028 = scalar_lea.sflag [#allocation5], %s1027
        %s1029 = sand.u32 %s161, 1
        %s1030 = smul.addr %s1029, 64
        %s1031 = scalar_lea.vmem [#allocation11], %s1030
        // Predicated region
        $region65: #{tpu_custom_call.1} parent=39 // pred_check
          %p1032 = pneg %p171
        $region66: #{tpu_custom_call.1} parent=39 // pred_check_branch
          %1034 = sbr.rel (%p1032) target = $region68
        $region67: #{tpu_custom_call.1} parent=39 // pred_region
          %s1035 = smul.u32 16, %s28
          %1037 = vsyncadd %s1028, 0
          %s1038 = smul.addr %s1035, 4
          %s1039 = scalar_lea.hbm %s5, %s1038
          %s1040 = sshll.u32 %s1031, 4
          %s1041 = int_to_ptr.vmem [resolvable:$true] %s1040
          %s1042 = sshll.u32 %s1039, 4
          %s1043 = int_to_ptr.hbm [resolvable:$true] %s1042
          %1048 = dma.vmem_to_hbm [thread:$0]  %s1041, 1024, %s1043, %s1028, 64, 64, 4
        $region68: #{tpu_custom_call.1} parent=39 // pred_fallthru
          _
      $region40: #{tpu_custom_call.1} parent=5 // pred_fallthru
        _
      %p1049 = scmp.le.s32.totalorder 2, %s19
      // Predicated region
      $region69: #{tpu_custom_call.1} parent=5 // pred_check
        %p1050 = pneg %p1049
      $region70: #{tpu_custom_call.1} parent=5 // pred_check_branch
        %1052 = sbr.rel (%p1050) target = $region72
      $region71: #{tpu_custom_call.1} parent=5 // pred_region
        %s1053 = ssub.s32 %s19, 2
        // Predicated region
        $region73: #{tpu_custom_call.1} parent=71 // pred_check
          %p1054 = pneg %p177
        $region74: #{tpu_custom_call.1} parent=71 // pred_check_branch
          %1056 = sbr.rel (%p1054) target = $region76
        $region75: #{tpu_custom_call.1} parent=71 // pred_region
          %s1057 = sand.u32 %s162, 1
          %s1058 = scalar_lea.sflag [#allocation5], %s1057
          %s1059 = sand.u32 %s162, 1
          %s1060 = smul.addr %s1059, 64
          %s1061 = scalar_lea.vmem [#allocation11], %s1060
          %1063 = dma.done %s1058, 1024
        $region76: #{tpu_custom_call.1} parent=71 // pred_fallthru
          _
      $region72: #{tpu_custom_call.1} parent=5 // pred_fallthru
        _
    $region6: #{tpu_custom_call.1} parent=1 // loop_footer
      %s23 = sadd.s32 1, %s19
    $region7: #{tpu_custom_call.1} parent=1 // loop_footer_branch
      %18 = sbr.rel target = $region3
    $region8: #{tpu_custom_call.1} parent=1 // loop_exit
      _
    %1064 = vsyncpa [#allocation4], 1
    %s1065 = scalar_lea.sflag [#allocation4], 1
    %1066 = vsyncpa %s1065, 1
    %1067 = vsyncpa [#allocation7], 1
    %1068 = vsyncpa [#allocation10], 1
    %1069 = vsyncpa [#allocation5], 1
    %s1070 = scalar_lea.sflag [#allocation5], 1
    %1071 = vsyncpa %s1070, 1

</llo_original>
